<compile_context>
chip_gen: v6e
topology: v6e:2x2x1
jax: 0.10.0
libtpu: 0.0.40
codegen_flags: <defaults>
</compile_context>

<pallas_src>
import functools

import jax
import jax.numpy as jnp
from jax import lax
from jax.experimental import pallas as pl
from jax.experimental.pallas import tpu as pltpu


_FUSED_MAX_HW = 256          # fused single-matmul path only for H*W <= 256 (H=W<=16)
_TARGET_BLOCK_BYTES = 1 << 20  # aim for ~1 MB blocks (fits v5e/v6e/v7x guidance)


def _compute_dtype(x_dtype):
    """Matmul operand dtype: native float dtype, or bf16 for integer images (exact)."""
    x_dtype = jnp.dtype(x_dtype)
    if x_dtype in (jnp.dtype(jnp.float32), jnp.dtype(jnp.bfloat16), jnp.dtype(jnp.float16)):
        return x_dtype
    return jnp.dtype(jnp.bfloat16)   # e.g. uint8 pixels: 0..255 are exact in bf16


def _samples_per_block(n, per_sample_bytes):
    """Largest divisor of n giving ~<=1MB blocks while keeping grid length >= 2."""
    cap = max(1, _TARGET_BLOCK_BYTES // max(int(per_sample_bytes), 1))
    if n >= 2:
        cap = min(cap, n // 2)       # grid >= 2 so both v7x TensorCores are used
    cap = max(1, min(cap, n))
    best = 1
    for d in range(1, cap + 1):
        if n % d == 0:
            best = d
    return best


def _fused_shift_kernel(src_ref, x_ref, o_ref, *, compute_dtype):
    """out[b, ch, o] = x[b, ch, src[b, o]] via one lane-dense one-hot matmul per sample.

    src_ref: (B, 1, HW) int32 -- flat source-pixel index per output pixel
    x_ref:   (B, C, HW) input dtype
    o_ref:   (B, C, HW) output dtype
    """
    bsz, _, hw = x_ref.shape
    # Sample-independent iota, hoisted out of the per-sample loop.
    s_iota = lax.broadcasted_iota(jnp.int32, (hw, hw), 0)       # s_iota[s, o] = s
    one = jnp.ones((), compute_dtype)
    zero = jnp.zeros((), compute_dtype)

    def per_sample(bi, carry):
        src = src_ref[bi]                                        # (1, HW) int32
        # One-hot column selector in the compute dtype; implicit (1,HW)->(HW,HW) bcast.
        sel = jnp.where(s_iota == src, one, zero)                # (HW, HW)
        xb = x_ref[bi].astype(compute_dtype)                     # (C, HW)
        o_ref[bi] = jnp.dot(xb, sel,
                            preferred_element_type=jnp.float32).astype(o_ref.dtype)
        return carry

    lax.fori_loop(0, bsz, per_sample, 0, unroll=(bsz <= 8))


def _two_matmul_shift_kernel(shift_ref, x_ref, o_ref, *, pad, compute_dtype):
    """Row + column one-hot selection, B samples per block, selectors shared over C.

    shift_ref: (N, 2) int32 in SMEM (scalar-prefetched), (x, y) shift per sample
    x_ref:     (B, C, H, W) input dtype
    o_ref:     (B, C, H, W) output dtype
    """
    bsz, c, h, w = x_ref.shape
    blk = pl.program_id(0)
    one = jnp.ones((), compute_dtype)
    zero = jnp.zeros((), compute_dtype)

    # Sample-independent iotas, hoisted out of the per-sample loop.
    src_col = lax.broadcasted_iota(jnp.int32, (w, w), 0)
    out_col = lax.broadcasted_iota(jnp.int32, (w, w), 1)
    out_row = lax.broadcasted_iota(jnp.int32, (h, h), 0)
    src_row = lax.broadcasted_iota(jnp.int32, (h, h), 1)

    def per_sample(bi, carry):
        idx = blk * bsz + bi
        dx = shift_ref[idx, 0] - pad    # signed column offset into the original image
        dy = shift_ref[idx, 1] - pad    # signed row offset into the original image

        # Ct[k, j] = (k == clip(j + dx, 0, w-1)); R[i, r] = (r == clip(i + dy, 0, h-1)).
        sel_c = jnp.where(src_col == jnp.clip(out_col + dx, 0, w - 1), one, zero)  # (W,W)
        sel_r = jnp.where(src_row == jnp.clip(out_row + dy, 0, h - 1), one, zero)  # (H,H)

        # Selectors reused across channels -- no broadcast_to to (C, ., .).
        for ci in range(c):
            xc = x_ref[bi, ci].astype(compute_dtype)                       # (H, W)
            t = jnp.dot(xc, sel_c, preferred_element_type=jnp.float32)     # cols
            yc = jnp.dot(sel_r, t.astype(compute_dtype),
                         preferred_element_type=jnp.float32)               # rows
            o_ref[bi, ci] = yc.astype(o_ref.dtype)
        return carry

    lax.fori_loop(0, bsz, per_sample, 0, unroll=(bsz <= 8))


def _flat_source_index(shift, h, w, pad):
    """(N, 1, H*W) int32: flattened source pixel for every output pixel (tiny)."""
    n = shift.shape[0]
    dx = shift[:, 0:1] - pad                                                  # (N, 1)
    dy = shift[:, 1:2] - pad
    rows = jnp.clip(jnp.arange(h, dtype=jnp.int32)[None, :] + dy, 0, h - 1)   # (N, H)
    cols = jnp.clip(jnp.arange(w, dtype=jnp.int32)[None, :] + dx, 0, w - 1)   # (N, W)
    src = rows[:, :, None] * w + cols[:, None, :]                             # (N, H, W)
    return src.reshape(n, 1, h * w)


def apply_random_shifts(x, shift, pad, out_dtype=jnp.float32):
    """Apply per-sample integer (x, y) shifts with replicate padding.

    x: (N, C, H, W) any float/int image dtype; shift: (N, 2) int32 in [0, 2*pad].
    Returns (N, C, H, W) in `out_dtype` (default float32, matching the module)."""
    n, c, h, w = x.shape
    assert h == w
    hw = h * w
    out_dtype = jnp.dtype(out_dtype)
    cdt = _compute_dtype(x.dtype)
    x_itemsize = jnp.dtype(x.dtype).itemsize

    if hw <= _FUSED_MAX_HW:
        # Lane-dense fused path: one (C, HW) @ (HW, HW) one-hot matmul per sample.
        per_sample_bytes = c * hw * (x_itemsize + out_dtype.itemsize) + hw * 4
        bs = _samples_per_block(n, per_sample_bytes)
        src = _flat_source_index(shift, h, w, pad)       # (N, 1, HW) int32
        x_flat = x.reshape(n, c, hw)                     # free: trailing dims only
        kernel = functools.partial(_fused_shift_kernel, compute_dtype=cdt)
        out = pl.pallas_call(
            kernel,
            out_shape=jax.ShapeDtypeStruct((n, c, hw), out_dtype),
            grid=(n // bs,),
            in_specs=[
                pl.BlockSpec((bs, 1, hw), lambda i: (i, 0, 0)),
                pl.BlockSpec((bs, c, hw), lambda i: (i, 0, 0)),
            ],
            out_specs=pl.BlockSpec((bs, c, hw), lambda i: (i, 0, 0)),
            compiler_params=pltpu.CompilerParams(
                dimension_semantics=("parallel",)),
        )(src, x_flat)
        return out.reshape(n, c, h, w)

    # General path: two small one-hot matmuls per (sample, channel).
    per_sample_bytes = c * h * w * (x_itemsize + out_dtype.itemsize)
    bs = _samples_per_block(n, per_sample_bytes)
    kernel = functools.partial(_two_matmul_shift_kernel, pad=pad, compute_dtype=cdt)
    return pl.pallas_call(
        kernel,
        out_shape=jax.ShapeDtypeStruct((n, c, h, w), out_dtype),
        grid_spec=pltpu.PrefetchScalarGridSpec(
            num_scalar_prefetch=1,
            grid=(n // bs,),
            in_specs=[pl.BlockSpec((bs, c, h, w), lambda i, s: (i, 0, 0, 0))],
            out_specs=pl.BlockSpec((bs, c, h, w), lambda i, s: (i, 0, 0, 0)),
        ),
        compiler_params=pltpu.CompilerParams(
            dimension_semantics=("parallel",)),
    )(shift, x)


def random_shifts_aug(x, key, pad, out_dtype=jnp.float32):
    """JAX/Pallas equivalent of RandomShiftsAug(pad)(x).

    Returns (augmented images in `out_dtype`, (N, 2) int32 shifts in [0, 2*pad])."""
    n = x.shape[0]
    # torch.randint(0, 2*pad+1, size=(n, 1, 1, 2)): independent (sx, sy) per sample.
    shift = jax.random.randint(key, (n, 2), 0, 2 * pad + 1, dtype=jnp.int32)
    return apply_random_shifts(x, shift, pad, out_dtype=out_dtype), shift


def _reference(x, shift, pad):
    """Pure-JAX reference: replicate pad + per-sample integer crop (float32)."""
    x = jnp.asarray(x, dtype=jnp.float32)
    n, c, h, w = x.shape
    xp = jnp.pad(x, ((0, 0), (0, 0), (pad, pad), (pad, pad)), mode="edge")
    outs = []
    for b in range(n):
        sx, sy = int(shift[b, 0]), int(shift[b, 1])
        outs.append(lax.dynamic_slice(xp[b], (0, sy, sx), (c, h, w)))
    return jnp.stack(outs, axis=0)


if __name__ == "__main__":
    key = jax.random.PRNGKey(0)
    k_x1, k_s1, k_x2, k_s2, k_s3 = jax.random.split(key, 5)

    # 1) Small images -> fused lane-dense single-matmul path (f32 in / f32 out).
    n, c, h, w, pad = 4, 4, 16, 16, 4
    x = jax.random.normal(k_x1, (n, c, h, w), dtype=jnp.float32)
    out, shift = random_shifts_aug(x, k_s1, pad)
    out = jax.block_until_ready(out)
    ref = _reference(x, jax.device_get(shift), pad)
    assert out.shape == (n, c, h, w) and out.dtype == jnp.float32
    assert jnp.allclose(out, ref, atol=1e-6), "fused path mismatch vs reference"

    # 1b) Same path with a bf16 output (exercise the out_dtype parameter).
    out_bf16, shift_b = random_shifts_aug(x, k_s1, pad, out_dtype=jnp.bfloat16)
    out_bf16 = jax.block_until_ready(out_bf16)
    ref_b = _reference(x, jax.device_get(shift_b), pad).astype(jnp.bfloat16)
    assert out_bf16.dtype == jnp.bfloat16
    assert jnp.allclose(out_bf16.astype(jnp.float32), ref_b.astype(jnp.float32),
                        atol=1e-6), "fused bf16-output mismatch vs reference"

    # 2) Larger spatial size -> batched two-matmul path (f32).
    n2, c2, h2, w2, pad2 = 4, 3, 40, 40, 4
    x2 = jax.random.normal(k_x2, (n2, c2, h2, w2), dtype=jnp.float32)
    out2, shift2 = random_shifts_aug(x2, k_s2, pad2)
    out2 = jax.block_until_ready(out2)
    ref2 = _reference(x2, jax.device_get(shift2), pad2)
    assert jnp.allclose(out2, ref2, atol=1e-6), "two-matmul path mismatch vs reference"

    # 3) Native-dtype operands: bf16 input, f32 output (selection is exact in bf16).
    x3 = x2.astype(jnp.bfloat16)
    out3, shift3 = random_shifts_aug(x3, k_s3, pad2)
    out3 = jax.block_until_ready(out3)
    ref3 = _reference(x3.astype(jnp.float32), jax.device_get(shift3), pad2)
    assert out3.dtype == jnp.float32
    assert jnp.allclose(out3, ref3, atol=1e-6), "bf16-input path mismatch vs reference"

    print("KERNEL_OK")
</pallas_src>

<mosaic_0001>
module attributes {stable_mosaic.version = 11 : i64} {
  func.func @_fused_shift_kernel(%arg0: i32, %arg1: memref<2x1x256xi32, #tpu.memory_space<vmem>>, %arg2: memref<2x4x256xf32, #tpu.memory_space<vmem>>, %arg3: memref<2x4x256xf32, #tpu.memory_space<vmem>>) attributes {dimension_semantics = [#tpu.dimension_semantics<parallel>], iteration_bounds = array<i64: 2>, scalar_prefetch = 0 : i64, scratch_operands = 0 : i64, tpu.core_type = #tpu.core_type<tc>, window_params = [{transform_indices = @transform_0, window_bounds = array<i64: 2, 1, 256>}, {transform_indices = @transform_1, window_bounds = array<i64: 2, 4, 256>}, {transform_indices = @transform_2, window_bounds = array<i64: 2, 4, 256>}]} {
    %0 = tpu.iota {dimensions = array<i32: 0>} : vector<256x256xi32>
    %cst = arith.constant 1.000000e+00 : f32
    %cst_0 = arith.constant 0.000000e+00 : f32
    %c0_i32 = arith.constant 0 : i32
    %1 = arith.index_cast %c0_i32 : i32 to index
    %c0 = arith.constant 0 : index
    %c0_1 = arith.constant 0 : index
    %2 = vector.load %arg1[%1, %c0, %c0_1] : memref<2x1x256xi32, #tpu.memory_space<vmem>>, vector<1x1x256xi32>
    %3 = vector.shape_cast %2 : vector<1x1x256xi32> to vector<1x256xi32>
    %4 = vector.broadcast %3 : vector<1x256xi32> to vector<256x256xi32>
    %5 = arith.cmpi eq, %0, %4 : vector<256x256xi32>
    %6 = vector.broadcast %cst : f32 to vector<256x256xf32>
    %7 = vector.broadcast %cst_0 : f32 to vector<256x256xf32>
    %8 = arith.select %5, %6, %7 : vector<256x256xi1>, vector<256x256xf32>
    %9 = arith.index_cast %c0_i32 : i32 to index
    %c0_2 = arith.constant 0 : index
    %c0_3 = arith.constant 0 : index
    %10 = vector.load %arg2[%9, %c0_2, %c0_3] : memref<2x4x256xf32, #tpu.memory_space<vmem>>, vector<1x4x256xf32>
    %11 = vector.shape_cast %10 : vector<1x4x256xf32> to vector<4x256xf32>
    %cst_4 = arith.constant dense<0.000000e+00> : vector<4x256xf32>
    %12 = tpu.matmul %11, %8, %cst_4 {dimension_numbers = #tpu.dot_dimension_numbers<[1], [0], [0], [1], [0, 0, 1, 1], [], []>} : vector<4x256xf32>, vector<256x256xf32>, vector<4x256xf32> -> vector<4x256xf32>
    %13 = arith.index_cast %c0_i32 : i32 to index
    %c0_5 = arith.constant 0 : index
    %c0_6 = arith.constant 0 : index
    %14 = vector.load %arg3[%13, %c0_5, %c0_6] : memref<2x4x256xf32, #tpu.memory_space<vmem>>, vector<1x4x256xf32>
    %15 = vector.shape_cast %14 : vector<1x4x256xf32> to vector<4x256xf32>
    %16 = vector.shape_cast %12 : vector<4x256xf32> to vector<1x4x256xf32>
    tpu.vector_store %arg3[%13, %c0_5, %c0_6], %16 {strides = array<i32>} : memref<2x4x256xf32, #tpu.memory_space<vmem>>, vector<1x4x256xf32>,
    %c1_i32 = arith.constant 1 : i32
    %17 = arith.index_cast %c1_i32 : i32 to index
    %c0_7 = arith.constant 0 : index
    %c0_8 = arith.constant 0 : index
    %18 = vector.load %arg1[%17, %c0_7, %c0_8] : memref<2x1x256xi32, #tpu.memory_space<vmem>>, vector<1x1x256xi32>
    %19 = vector.shape_cast %18 : vector<1x1x256xi32> to vector<1x256xi32>
    %20 = vector.broadcast %19 : vector<1x256xi32> to vector<256x256xi32>
    %21 = arith.cmpi eq, %0, %20 : vector<256x256xi32>
    %22 = vector.broadcast %cst : f32 to vector<256x256xf32>
    %23 = vector.broadcast %cst_0 : f32 to vector<256x256xf32>
    %24 = arith.select %21, %22, %23 : vector<256x256xi1>, vector<256x256xf32>
    %25 = arith.index_cast %c1_i32 : i32 to index
    %c0_9 = arith.constant 0 : index
    %c0_10 = arith.constant 0 : index
    %26 = vector.load %arg2[%25, %c0_9, %c0_10] : memref<2x4x256xf32, #tpu.memory_space<vmem>>, vector<1x4x256xf32>
    %27 = vector.shape_cast %26 : vector<1x4x256xf32> to vector<4x256xf32>
    %cst_11 = arith.constant dense<0.000000e+00> : vector<4x256xf32>
    %28 = tpu.matmul %27, %24, %cst_11 {dimension_numbers = #tpu.dot_dimension_numbers<[1], [0], [0], [1], [0, 0, 1, 1], [], []>} : vector<4x256xf32>, vector<256x256xf32>, vector<4x256xf32> -> vector<4x256xf32>
    %29 = arith.index_cast %c1_i32 : i32 to index
    %c0_12 = arith.constant 0 : index
    %c0_13 = arith.constant 0 : index
    %30 = vector.load %arg3[%29, %c0_12, %c0_13] : memref<2x4x256xf32, #tpu.memory_space<vmem>>, vector<1x4x256xf32>
    %31 = vector.shape_cast %30 : vector<1x4x256xf32> to vector<4x256xf32>
    %32 = vector.shape_cast %28 : vector<4x256xf32> to vector<1x4x256xf32>
    tpu.vector_store %arg3[%29, %c0_12, %c0_13], %32 {strides = array<i32>} : memref<2x4x256xf32, #tpu.memory_space<vmem>>, vector<1x4x256xf32>,
    %c2_i32 = arith.constant 2 : i32
    return
  }
  func.func @transform_0(%arg0: i32) -> (i32, i32, i32) {
    %c0_i32 = arith.constant 0 : i32
    %c0_i32_0 = arith.constant 0 : i32
    %c0_i32_1 = arith.constant 0 : i32
    return %arg0, %c0_i32, %c0_i32_0 : i32, i32, i32
  }
  func.func @transform_1(%arg0: i32) -> (i32, i32, i32) {
    %c0_i32 = arith.constant 0 : i32
    %c0_i32_0 = arith.constant 0 : i32
    %c0_i32_1 = arith.constant 0 : i32
    return %arg0, %c0_i32, %c0_i32_0 : i32, i32, i32
  }
  func.func @transform_2(%arg0: i32) -> (i32, i32, i32) {
    %c0_i32 = arith.constant 0 : i32
    %c0_i32_0 = arith.constant 0 : i32
    %c0_i32_1 = arith.constant 0 : i32
    return %arg0, %c0_i32, %c0_i32_0 : i32, i32, i32
  }
}

</mosaic_0001>

<llo_original>
// kernel: tpu_custom_call.1
$region0: #{tpu_custom_call.1}
  #allocation0 [shape = 'u32[]', space=smem, size = 0x4, offset = 0x4, fixed_abs, tag = 'smem constant byte address 0x4 - core index']
  #allocation1 [shape = 'u32[144,128]{1,0:T(1,128)}', space=vmem, size = 0x12000, scoped, tag = 'internal scratch']
  %s0 = inlined_call_operand.hbm [shape: s32[4,1,256], index: 0, kind: input, shape index: {}]
  %s1 = inlined_call_operand.hbm [shape: f32[4,4,256], index: 1, kind: input, shape index: {}]
  %s2 = inlined_call_operand.hbm [shape: f32[4,4,256], index: 2, kind: output, shape index: {}]
  %s3 = sld [smem:[#allocation0]]
  $region49: #{tpu_custom_call.1} parent=0
    _
  %s5 = ssub.s32 1, %s3
  %s6 = scalar_select 0, %s5, %s3
  $region1: #{tpu_custom_call.1} parent=0
    #allocation2 [shape = 'u8[4096]{0}', space=vmem, size = 0x1000, scoped, tag = 'input window, operand 0']
    #allocation3 [shape = 's32[2]{0}', space=sflag, size = 0x8, scoped, tag = 'scoped memory for tpu_custom_call.1']
    #allocation4 [shape = 's32[2]{0}', space=sflag, size = 0x8, scoped, tag = 'scoped memory for tpu_custom_call.1']
    #allocation5 [shape = 'u8[16384]{0}', space=vmem, size = 0x4000, scoped, tag = 'input window, operand 1']
    #allocation6 [shape = 's32[2]{0}', space=sflag, size = 0x8, scoped, tag = 'scoped memory for tpu_custom_call.1']
    #allocation7 [shape = 'u8[16384]{0}', space=vmem, size = 0x4000, scoped, tag = 'output window, operand 0']
    %7 = vsyncpa [#allocation3], 0
    %s8 = scalar_lea.sflag [#allocation3], 1
    %9 = vsyncpa %s8, 0
    %10 = vsyncpa [#allocation6], 0
    %s11 = scalar_lea.sflag [#allocation6], 1
    %12 = vsyncpa %s11, 0
    %13 = vsyncpa [#allocation4], 0
    %s14 = scalar_lea.sflag [#allocation4], 1
    %15 = vsyncpa %s14, 0
    loop: start=0, step=1, limit=4
    $region2: #{tpu_custom_call.1} parent=1 // loop_pre_header
      _
    $region3: #{tpu_custom_call.1} parent=1 // loop_header
      %s17 = sphi 0, %s21
      %p18 = scmp.ge.s32.totalorder %s17, 4
      %s27 = sphi 0, %s29
      %s30 = sphi 0, %s27
      %s31 = sphi 0, %s30
      %s47 = sphi 0, %s31
      %s53 = sphi 0, %s55
      %s56 = sphi 0, %s53
      %s57 = sphi 0, %s56
      %s73 = sphi 0, %s57
      %s79 = sphi 0, %s81
      %s82 = sphi 0, %s79
      %s83 = sphi 0, %s82
      %s99 = sphi 0, %s83
    $region4: #{tpu_custom_call.1} parent=1 // loop_header_branch
      %20 = sbr.rel (%p18) target = $region8
    $region5: #{tpu_custom_call.1} parent=1 // loop_body
      %s22 = ssub.s32 %s17, 1
      %s23 = ssub.s32 %s17, 2
      %s24 = sadd.s32 %s17, 1
      %s25 = ssub.s32 %s17, %s24
      %p26 = scmp.eq.s32.totalorder %s25, 0
      %s28 = sadd.s32 %s27, 1
      %s29 = scalar_select %p26, %s27, %s28
      %p32 = pneg %p26
      %p33 = scmp.eq.s32.totalorder %s17, 1
      %p34 = por %p32, %p33
      %p35 = scmp.ne.s32.totalorder %s27, %s30
      %p36 = scmp.eq.s32.totalorder %s17, 0
      %p37 = por %p35, %p36
      %p38 = scmp.ne.s32.totalorder %s27, %s30
      %p39 = scmp.eq.s32.totalorder %s22, 1
      %p40 = por %p38, %p39
      %p41 = scmp.ne.s32.totalorder %s30, %s31
      %p42 = scmp.eq.s32.totalorder %s22, 0
      %p43 = por %p41, %p42
      %p44 = scmp.ne.s32.totalorder %s30, %s31
      %p45 = scmp.eq.s32.totalorder %s23, 1
      %p46 = por %p44, %p45
      %p48 = scmp.ne.s32.totalorder %s31, %s47
      %p49 = scmp.eq.s32.totalorder %s23, 0
      %p50 = por %p48, %p49
      %s51 = ssub.s32 %s17, %s24
      %p52 = scmp.eq.s32.totalorder %s51, 0
      %s54 = sadd.s32 %s53, 1
      %s55 = scalar_select %p52, %s53, %s54
      %p58 = pneg %p52
      %p59 = scmp.eq.s32.totalorder %s17, 1
      %p60 = por %p58, %p59
      %p61 = scmp.ne.s32.totalorder %s53, %s56
      %p62 = scmp.eq.s32.totalorder %s17, 0
      %p63 = por %p61, %p62
      %p64 = scmp.ne.s32.totalorder %s53, %s56
      %p65 = scmp.eq.s32.totalorder %s22, 1
      %p66 = por %p64, %p65
      %p67 = scmp.ne.s32.totalorder %s56, %s57
      %p68 = scmp.eq.s32.totalorder %s22, 0
      %p69 = por %p67, %p68
      %p70 = scmp.ne.s32.totalorder %s56, %s57
      %p71 = scmp.eq.s32.totalorder %s23, 1
      %p72 = por %p70, %p71
      %p74 = scmp.ne.s32.totalorder %s57, %s73
      %p75 = scmp.eq.s32.totalorder %s23, 0
      %p76 = por %p74, %p75
      %s77 = ssub.s32 %s17, %s24
      %p78 = scmp.eq.s32.totalorder %s77, 0
      %s80 = sadd.s32 %s79, 1
      %s81 = scalar_select %p78, %s79, %s80
      %p84 = pneg %p78
      %p85 = scmp.eq.s32.totalorder %s17, 1
      %p86 = por %p84, %p85
      %p87 = scmp.ne.s32.totalorder %s79, %s82
      %p88 = scmp.eq.s32.totalorder %s17, 0
      %p89 = por %p87, %p88
      %p90 = scmp.ne.s32.totalorder %s79, %s82
      %p91 = scmp.eq.s32.totalorder %s22, 1
      %p92 = por %p90, %p91
      %p93 = scmp.ne.s32.totalorder %s82, %s83
      %p94 = scmp.eq.s32.totalorder %s22, 0
      %p95 = por %p93, %p94
      %p96 = scmp.ne.s32.totalorder %s82, %s83
      %p97 = scmp.eq.s32.totalorder %s23, 1
      %p98 = por %p96, %p97
      %p100 = scmp.ne.s32.totalorder %s83, %s99
      %p101 = scmp.eq.s32.totalorder %s23, 0
      %p102 = por %p100, %p101
      %p103 = scmp.le.s32.totalorder 1, %s17
      %p104 = scmp.lt.s32.totalorder %s17, 3
      %p105 = pnand %p103, %p104
      %p106 = pneg %p105
      // Predicated region
      $region9: #{tpu_custom_call.1} parent=5 // pred_check
        _
      $region10: #{tpu_custom_call.1} parent=5 // pred_check_branch
        %108 = sbr.rel (%p105) target = $region12
      $region11: #{tpu_custom_call.1} parent=5 // pred_region
        %s109 = ssub.s32 %s17, 1
      $region12: #{tpu_custom_call.1} parent=5 // pred_fallthru
        _
      %p110 = scmp.lt.s32.totalorder %s17, 2
      // Predicated region
      $region13: #{tpu_custom_call.1} parent=5 // pred_check
        %p111 = pneg %p110
      $region14: #{tpu_custom_call.1} parent=5 // pred_check_branch
        %113 = sbr.rel (%p111) target = $region16
      $region15: #{tpu_custom_call.1} parent=5 // pred_region
        // Predicated region
        $region17: #{tpu_custom_call.1} parent=15 // pred_check
          %p114 = pneg %p37
        $region18: #{tpu_custom_call.1} parent=15 // pred_check_branch
          %116 = sbr.rel (%p114) target = $region20
        $region19: #{tpu_custom_call.1} parent=15 // pred_region
          %s117 = sand.u32 %s27, 1
          %s118 = scalar_lea.sflag [#allocation3], %s117
          %s119 = sand.u32 %s27, 1
          %s120 = smul.addr %s119, 4
          %s121 = scalar_lea.vmem [#allocation2], %s120
          %s122 = smul.u32 2, %s17
          %s124 = ssub.s32 64, 64
          %125 = vsyncadd %s118, %s124
          %s126 = smul.addr %s122, 2
          %s127 = smul.addr %s126, 16
          %s128 = scalar_lea.hbm %s0, %s127
          %s129 = sshll.u32 %s121, 4
          %s130 = int_to_ptr.vmem [resolvable:$true] %s129
          %135 = dma.hbm_to_vmem [thread:$0]  %s128, 64, %s130, %s118, 32, 32, 2
        $region20: #{tpu_custom_call.1} parent=15 // pred_fallthru
          _
        // Predicated region
        $region21: #{tpu_custom_call.1} parent=15 // pred_check
          %p136 = pneg %p63
        $region22: #{tpu_custom_call.1} parent=15 // pred_check_branch
          %138 = sbr.rel (%p136) target = $region24
        $region23: #{tpu_custom_call.1} parent=15 // pred_region
          %s139 = sand.u32 %s53, 1
          %s140 = scalar_lea.sflag [#allocation6], %s139
          %s141 = sand.u32 %s53, 1
          %s142 = smul.addr %s141, 16
          %s143 = scalar_lea.vmem [#allocation5], %s142
          %s144 = smul.u32 2, %s17
          %s146 = ssub.s32 256, 256
          %147 = vsyncadd %s140, %s146
          %s148 = smul.addr %s144, 2
          %s149 = smul.addr %s148, 64
          %s150 = scalar_lea.hbm %s1, %s149
          %s151 = sshll.u32 %s143, 4
          %s152 = int_to_ptr.vmem [resolvable:$true] %s151
          %157 = dma.hbm_to_vmem [thread:$0]  %s150, 256, %s152, %s140, 128, 128, 8
        $region24: #{tpu_custom_call.1} parent=15 // pred_fallthru
          _
      $region16: #{tpu_custom_call.1} parent=5 // pred_fallthru
        _
      %p158 = scmp.le.s32.totalorder 1, %s17
      %p159 = scmp.lt.s32.totalorder %s17, 3
      %p160 = pnand %p158, %p159
      %p161 = pneg %p160
      // Predicated region
      $region25: #{tpu_custom_call.1} parent=5 // pred_check
        _
      $region26: #{tpu_custom_call.1} parent=5 // pred_check_branch
        %163 = sbr.rel (%p160) target = $region28
      $region27: #{tpu_custom_call.1} parent=5 // pred_region
        %s164 = ssub.s32 %s17, 1
        %s165 = sand.u32 %s30, 1
        %s166 = scalar_lea.sflag [#allocation3], %s165
        %s167 = sand.u32 %s30, 1
        %s168 = smul.addr %s167, 4
        %s169 = scalar_lea.vmem [#allocation2], %s168
        // Predicated region
        $region29: #{tpu_custom_call.1} parent=27 // pred_check
          %p170 = pneg %p43
        $region30: #{tpu_custom_call.1} parent=27 // pred_check_branch
          %172 = sbr.rel (%p170) target = $region32
        $region31: #{tpu_custom_call.1} parent=27 // pred_region
          %173 = dma.done %s166, 64
        $region32: #{tpu_custom_call.1} parent=27 // pred_fallthru
          _
        %s174 = sand.u32 %s56, 1
        %s175 = scalar_lea.sflag [#allocation6], %s174
        %s176 = sand.u32 %s56, 1
        %s177 = smul.addr %s176, 16
        %s178 = scalar_lea.vmem [#allocation5], %s177
        // Predicated region
        $region33: #{tpu_custom_call.1} parent=27 // pred_check
          %p179 = pneg %p69
        $region34: #{tpu_custom_call.1} parent=27 // pred_check_branch
          %181 = sbr.rel (%p179) target = $region36
        $region35: #{tpu_custom_call.1} parent=27 // pred_region
          %182 = dma.done %s175, 256
        $region36: #{tpu_custom_call.1} parent=27 // pred_fallthru
          _
        %s183 = sand.u32 %s30, 1
        %s184 = scalar_lea.sflag [#allocation3], %s183
        %s185 = sand.u32 %s30, 1
        %s186 = smul.addr %s185, 4
        %s187 = scalar_lea.vmem [#allocation2], %s186
        %p188 = pneg %p43
        %p189 = pneg %p40
        %s190 = sand.u32 %s56, 1
        %s191 = scalar_lea.sflag [#allocation6], %s190
        %s192 = sand.u32 %s56, 1
        %s193 = smul.addr %s192, 16
        %s194 = scalar_lea.vmem [#allocation5], %s193
        %p195 = pneg %p69
        %p196 = pneg %p66
        %p197 = pneg %p95
        %p198 = pneg %p92
        %s199 = sand.u32 %s82, 1
        %s200 = scalar_lea.sflag [#allocation4], %s199
        %s201 = sand.u32 %s82, 1
        %s202 = smul.addr %s201, 16
        %s203 = scalar_lea.vmem [#allocation7], %s202
        %s204 = smul.u32 2, %s22
        %s205 = smul.u32 2, %s22
        %s206 = smul.u32 2, %s22
        %v207 = vlaneseq
        %v208 = vshrl.u32 %v207, 7
        %v209 = vadd.s32 %v208, 8
        %v210 = vadd.s32 %v208, 16
        %v211 = vadd.s32 %v208, 24
        %v212 = vadd.s32 %v208, 32
        %v213 = vadd.s32 %v208, 40
        %v214 = vadd.s32 %v208, 48
        %v215 = vadd.s32 %v208, 56
        %v216 = vadd.s32 %v208, 64
        %v217 = vadd.s32 %v208, 72
        %v218 = vadd.s32 %v208, 80
        %v219 = vadd.s32 %v208, 88
        %v220 = vadd.s32 %v208, 96
        %v221 = vadd.s32 %v208, 104
        %v222 = vadd.s32 %v208, 112
        %v223 = vadd.s32 %v208, 120
        %v224 = vadd.s32 %v208, 128
        %v225 = vadd.s32 %v208, 136
        %v226 = vadd.s32 %v208, 144
        %v227 = vadd.s32 %v208, 152
        %v228 = vadd.s32 %v208, 160
        %v229 = vadd.s32 %v208, 168
        %v230 = vadd.s32 %v208, 176
        %v231 = vadd.s32 %v208, 184
        %v232 = vadd.s32 %v208, 192
        %v233 = vadd.s32 %v208, 200
        %v234 = vadd.s32 %v208, 208
        %v235 = vadd.s32 %v208, 216
        %v236 = vadd.s32 %v208, 224
        %v237 = vadd.s32 %v208, 232
        %v238 = vadd.s32 %v208, 240
        %v239 = vadd.s32 %v208, 248
        %v240 = vld [vmem:[%s169] sm:$0x3]
        %v241 = vlaneseq
        %v242 = vshrl.u32 %v241, 7
        %v243 = vsub.s32 0, %v242
        %v244 = vrot.slane %v240, %v243
        %v245 = vlaneseq
        %v246 = vshrl.u32 %v245, 7
        %v247 = vsub.s32 1, %v246
        %v248 = vrot.slane %v240, %v247
        %vm249 = vcmp.eq.s32.totalorder %v208, %v244
        %vm250 = vcmp.eq.s32.totalorder %v208, %v248
        %vm251 = vcmp.eq.s32.totalorder %v209, %v244
        %vm252 = vcmp.eq.s32.totalorder %v209, %v248
        %vm253 = vcmp.eq.s32.totalorder %v210, %v244
        %vm254 = vcmp.eq.s32.totalorder %v210, %v248
        %vm255 = vcmp.eq.s32.totalorder %v211, %v244
        %vm256 = vcmp.eq.s32.totalorder %v211, %v248
        %vm257 = vcmp.eq.s32.totalorder %v212, %v244
        %vm258 = vcmp.eq.s32.totalorder %v212, %v248
        %vm259 = vcmp.eq.s32.totalorder %v213, %v244
        %vm260 = vcmp.eq.s32.totalorder %v213, %v248
        %vm261 = vcmp.eq.s32.totalorder %v214, %v244
        %vm262 = vcmp.eq.s32.totalorder %v214, %v248
        %vm263 = vcmp.eq.s32.totalorder %v215, %v244
        %vm264 = vcmp.eq.s32.totalorder %v215, %v248
        %vm265 = vcmp.eq.s32.totalorder %v216, %v244
        %vm266 = vcmp.eq.s32.totalorder %v216, %v248
        %vm267 = vcmp.eq.s32.totalorder %v217, %v244
        %vm268 = vcmp.eq.s32.totalorder %v217, %v248
        %vm269 = vcmp.eq.s32.totalorder %v218, %v244
        %vm270 = vcmp.eq.s32.totalorder %v218, %v248
        %vm271 = vcmp.eq.s32.totalorder %v219, %v244
        %vm272 = vcmp.eq.s32.totalorder %v219, %v248
        %vm273 = vcmp.eq.s32.totalorder %v220, %v244
        %vm274 = vcmp.eq.s32.totalorder %v220, %v248
        %vm275 = vcmp.eq.s32.totalorder %v221, %v244
        %vm276 = vcmp.eq.s32.totalorder %v221, %v248
        %vm277 = vcmp.eq.s32.totalorder %v222, %v244
        %vm278 = vcmp.eq.s32.totalorder %v222, %v248
        %vm279 = vcmp.eq.s32.totalorder %v223, %v244
        %vm280 = vcmp.eq.s32.totalorder %v223, %v248
        %vm281 = vcmp.eq.s32.totalorder %v224, %v244
        %vm282 = vcmp.eq.s32.totalorder %v224, %v248
        %vm283 = vcmp.eq.s32.totalorder %v225, %v244
        %vm284 = vcmp.eq.s32.totalorder %v225, %v248
        %vm285 = vcmp.eq.s32.totalorder %v226, %v244
        %vm286 = vcmp.eq.s32.totalorder %v226, %v248
        %vm287 = vcmp.eq.s32.totalorder %v227, %v244
        %vm288 = vcmp.eq.s32.totalorder %v227, %v248
        %vm289 = vcmp.eq.s32.totalorder %v228, %v244
        %vm290 = vcmp.eq.s32.totalorder %v228, %v248
        %vm291 = vcmp.eq.s32.totalorder %v229, %v244
        %vm292 = vcmp.eq.s32.totalorder %v229, %v248
        %vm293 = vcmp.eq.s32.totalorder %v230, %v244
        %vm294 = vcmp.eq.s32.totalorder %v230, %v248
        %vm295 = vcmp.eq.s32.totalorder %v231, %v244
        %vm296 = vcmp.eq.s32.totalorder %v231, %v248
        %vm297 = vcmp.eq.s32.totalorder %v232, %v244
        %vm298 = vcmp.eq.s32.totalorder %v232, %v248
        %vm299 = vcmp.eq.s32.totalorder %v233, %v244
        %vm300 = vcmp.eq.s32.totalorder %v233, %v248
        %vm301 = vcmp.eq.s32.totalorder %v234, %v244
        %vm302 = vcmp.eq.s32.totalorder %v234, %v248
        %vm303 = vcmp.eq.s32.totalorder %v235, %v244
        %vm304 = vcmp.eq.s32.totalorder %v235, %v248
        %vm305 = vcmp.eq.s32.totalorder %v236, %v244
        %vm306 = vcmp.eq.s32.totalorder %v236, %v248
        %vm307 = vcmp.eq.s32.totalorder %v237, %v244
        %vm308 = vcmp.eq.s32.totalorder %v237, %v248
        %vm309 = vcmp.eq.s32.totalorder %v238, %v244
        %vm310 = vcmp.eq.s32.totalorder %v238, %v248
        %vm311 = vcmp.eq.s32.totalorder %v239, %v244
        %vm312 = vcmp.eq.s32.totalorder %v239, %v248
        %v313 = vsel %vm249, 1.0, 0.0
        %v314 = vsel %vm250, 1.0, 0.0
        %v315 = vsel %vm251, 1.0, 0.0
        %v316 = vsel %vm252, 1.0, 0.0
        %v317 = vsel %vm253, 1.0, 0.0
        %v318 = vsel %vm254, 1.0, 0.0
        %v319 = vsel %vm255, 1.0, 0.0
        %v320 = vsel %vm256, 1.0, 0.0
        %v321 = vsel %vm257, 1.0, 0.0
        %v322 = vsel %vm258, 1.0, 0.0
        %v323 = vsel %vm259, 1.0, 0.0
        %v324 = vsel %vm260, 1.0, 0.0
        %v325 = vsel %vm261, 1.0, 0.0
        %v326 = vsel %vm262, 1.0, 0.0
        %v327 = vsel %vm263, 1.0, 0.0
        %v328 = vsel %vm264, 1.0, 0.0
        %v329 = vsel %vm265, 1.0, 0.0
        %v330 = vsel %vm266, 1.0, 0.0
        %v331 = vsel %vm267, 1.0, 0.0
        %v332 = vsel %vm268, 1.0, 0.0
        %v333 = vsel %vm269, 1.0, 0.0
        %v334 = vsel %vm270, 1.0, 0.0
        %v335 = vsel %vm271, 1.0, 0.0
        %v336 = vsel %vm272, 1.0, 0.0
        %v337 = vsel %vm273, 1.0, 0.0
        %v338 = vsel %vm274, 1.0, 0.0
        %v339 = vsel %vm275, 1.0, 0.0
        %v340 = vsel %vm276, 1.0, 0.0
        %v341 = vsel %vm277, 1.0, 0.0
        %v342 = vsel %vm278, 1.0, 0.0
        %v343 = vsel %vm279, 1.0, 0.0
        %v344 = vsel %vm280, 1.0, 0.0
        %v345 = vsel %vm281, 1.0, 0.0
        %v346 = vsel %vm282, 1.0, 0.0
        %v347 = vsel %vm283, 1.0, 0.0
        %v348 = vsel %vm284, 1.0, 0.0
        %v349 = vsel %vm285, 1.0, 0.0
        %v350 = vsel %vm286, 1.0, 0.0
        %v351 = vsel %vm287, 1.0, 0.0
        %v352 = vsel %vm288, 1.0, 0.0
        %v353 = vsel %vm289, 1.0, 0.0
        %v354 = vsel %vm290, 1.0, 0.0
        %v355 = vsel %vm291, 1.0, 0.0
        %v356 = vsel %vm292, 1.0, 0.0
        %v357 = vsel %vm293, 1.0, 0.0
        %v358 = vsel %vm294, 1.0, 0.0
        %v359 = vsel %vm295, 1.0, 0.0
        %v360 = vsel %vm296, 1.0, 0.0
        %v361 = vsel %vm297, 1.0, 0.0
        %v362 = vsel %vm298, 1.0, 0.0
        %v363 = vsel %vm299, 1.0, 0.0
        %v364 = vsel %vm300, 1.0, 0.0
        %v365 = vsel %vm301, 1.0, 0.0
        %v366 = vsel %vm302, 1.0, 0.0
        %v367 = vsel %vm303, 1.0, 0.0
        %v368 = vsel %vm304, 1.0, 0.0
        %v369 = vsel %vm305, 1.0, 0.0
        %v370 = vsel %vm306, 1.0, 0.0
        %v371 = vsel %vm307, 1.0, 0.0
        %v372 = vsel %vm308, 1.0, 0.0
        %v373 = vsel %vm309, 1.0, 0.0
        %v374 = vsel %vm310, 1.0, 0.0
        %v375 = vsel %vm311, 1.0, 0.0
        %v376 = vsel %vm312, 1.0, 0.0
        %v377 = vld [vmem:[%s178] sm:$0xff]
        %v379 = vcombine.high %v377, %v377
        %381 = vmatprep.subr.mxu0 %v344
        %382 = vmatpush1.msra.mxu0 %v343
        %383 = vmatprep.subr.mxu0 %v342
        %384 = vmatpush1.msra.mxu0 %v341
        %385 = vmatprep.subr.mxu0 %v340
        %386 = vmatpush1.msra.mxu0 %v339
        %387 = vmatprep.subr.mxu0 %v338
        %388 = vmatpush1.msra.mxu0 %v337
        %389 = vmatprep.subr.mxu0 %v336
        %390 = vmatpush1.msra.mxu0 %v335
        %391 = vmatprep.subr.mxu0 %v334
        %392 = vmatpush1.msra.mxu0 %v333
        %393 = vmatprep.subr.mxu0 %v332
        %394 = vmatpush1.msra.mxu0 %v331
        %395 = vmatprep.subr.mxu0 %v330
        %396 = vmatpush1.msra.mxu0 %v329
        %397 = vmatprep.subr.mxu0 %v328
        %398 = vmatpush1.msra.mxu0 %v327
        %399 = vmatprep.subr.mxu0 %v326
        %400 = vmatpush1.msra.mxu0 %v325
        %401 = vmatprep.subr.mxu0 %v324
        %402 = vmatpush1.msra.mxu0 %v323
        %403 = vmatprep.subr.mxu0 %v322
        %404 = vmatpush1.msra.mxu0 %v321
        %405 = vmatprep.subr.mxu0 %v320
        %406 = vmatpush1.msra.mxu0 %v319
        %407 = vmatprep.subr.mxu0 %v318
        %408 = vmatpush1.msra.mxu0 %v317
        %409 = vmatprep.subr.mxu0 %v316
        %410 = vmatpush1.msra.mxu0 %v315
        %411 = vmatprep.subr.mxu0 %v314
        %412 = vmatpush1.msra.mxu0 %v313
        %413 = vmatprep.subr.mxu0 %v376
        %414 = vmatpush2.msra.mxu0 %v375
        %415 = vmatprep.subr.mxu0 %v374
        %416 = vmatpush2.msra.mxu0 %v373
        %417 = vmatprep.subr.mxu0 %v372
        %418 = vmatpush2.msra.mxu0 %v371
        %419 = vmatprep.subr.mxu0 %v370
        %420 = vmatpush2.msra.mxu0 %v369
        %421 = vmatprep.subr.mxu0 %v368
        %422 = vmatpush2.msra.mxu0 %v367
        %423 = vmatprep.subr.mxu0 %v366
        %424 = vmatpush2.msra.mxu0 %v365
        %425 = vmatprep.subr.mxu0 %v364
        %426 = vmatpush2.msra.mxu0 %v363
        %427 = vmatprep.subr.mxu0 %v362
        %428 = vmatpush2.msra.mxu0 %v361
        %429 = vmatprep.subr.mxu0 %v360
        %430 = vmatpush2.msra.mxu0 %v359
        %431 = vmatprep.subr.mxu0 %v358
        %432 = vmatpush2.msra.mxu0 %v357
        %433 = vmatprep.subr.mxu0 %v356
        %434 = vmatpush2.msra.mxu0 %v355
        %435 = vmatprep.subr.mxu0 %v354
        %436 = vmatpush2.msra.mxu0 %v353
        %437 = vmatprep.subr.mxu0 %v352
        %438 = vmatpush2.msra.mxu0 %v351
        %439 = vmatprep.subr.mxu0 %v350
        %440 = vmatpush2.msra.mxu0 %v349
        %441 = vmatprep.subr.mxu0 %v348
        %442 = vmatpush2.msra.mxu0 %v347
        %443 = vmatprep.subr.mxu0 %v346
        %444 = vmatpush2.msra.mxu0 %v345
        %445 = vmatprep.mubr.f32.mxu0 %v379
        %446 = vmatmul.mubr.f32.gmra.mxu0 %v377
        %v447 = vpop.f32.mrf.mxu0
        %v448 = vadd.f32 0.0, %v447
        %v449 = vpop.f32.mrf.mxu0
        %v450 = vadd.f32 0.0, %v449
        %451 = vdwg.mxu0
        %v454 = vcombine.low %v448, %v450
        %456 = vst [vmem:[%s203] sm:$0xff] %v454
        %s457 = scalar_lea.vmem %s169, 2 [#allocation2]
        %v458 = vld [vmem:[%s457] sm:$0x3]
        %v459 = vlaneseq
        %v460 = vshrl.u32 %v459, 7
        %v461 = vsub.s32 0, %v460
        %v462 = vrot.slane %v458, %v461
        %v463 = vlaneseq
        %v464 = vshrl.u32 %v463, 7
        %v465 = vsub.s32 1, %v464
        %v466 = vrot.slane %v458, %v465
        %vm467 = vcmp.eq.s32.totalorder %v208, %v462
        %vm468 = vcmp.eq.s32.totalorder %v208, %v466
        %vm469 = vcmp.eq.s32.totalorder %v209, %v462
        %vm470 = vcmp.eq.s32.totalorder %v209, %v466
        %vm471 = vcmp.eq.s32.totalorder %v210, %v462
        %vm472 = vcmp.eq.s32.totalorder %v210, %v466
        %vm473 = vcmp.eq.s32.totalorder %v211, %v462
        %vm474 = vcmp.eq.s32.totalorder %v211, %v466
        %vm475 = vcmp.eq.s32.totalorder %v212, %v462
        %vm476 = vcmp.eq.s32.totalorder %v212, %v466
        %vm477 = vcmp.eq.s32.totalorder %v213, %v462
        %vm478 = vcmp.eq.s32.totalorder %v213, %v466
        %vm479 = vcmp.eq.s32.totalorder %v214, %v462
        %vm480 = vcmp.eq.s32.totalorder %v214, %v466
        %vm481 = vcmp.eq.s32.totalorder %v215, %v462
        %vm482 = vcmp.eq.s32.totalorder %v215, %v466
        %vm483 = vcmp.eq.s32.totalorder %v216, %v462
        %vm484 = vcmp.eq.s32.totalorder %v216, %v466
        %vm485 = vcmp.eq.s32.totalorder %v217, %v462
        %vm486 = vcmp.eq.s32.totalorder %v217, %v466
        %vm487 = vcmp.eq.s32.totalorder %v218, %v462
        %vm488 = vcmp.eq.s32.totalorder %v218, %v466
        %vm489 = vcmp.eq.s32.totalorder %v219, %v462
        %vm490 = vcmp.eq.s32.totalorder %v219, %v466
        %vm491 = vcmp.eq.s32.totalorder %v220, %v462
        %vm492 = vcmp.eq.s32.totalorder %v220, %v466
        %vm493 = vcmp.eq.s32.totalorder %v221, %v462
        %vm494 = vcmp.eq.s32.totalorder %v221, %v466
        %vm495 = vcmp.eq.s32.totalorder %v222, %v462
        %vm496 = vcmp.eq.s32.totalorder %v222, %v466
        %vm497 = vcmp.eq.s32.totalorder %v223, %v462
        %vm498 = vcmp.eq.s32.totalorder %v223, %v466
        %vm499 = vcmp.eq.s32.totalorder %v224, %v462
        %vm500 = vcmp.eq.s32.totalorder %v224, %v466
        %vm501 = vcmp.eq.s32.totalorder %v225, %v462
        %vm502 = vcmp.eq.s32.totalorder %v225, %v466
        %vm503 = vcmp.eq.s32.totalorder %v226, %v462
        %vm504 = vcmp.eq.s32.totalorder %v226, %v466
        %vm505 = vcmp.eq.s32.totalorder %v227, %v462
        %vm506 = vcmp.eq.s32.totalorder %v227, %v466
        %vm507 = vcmp.eq.s32.totalorder %v228, %v462
        %vm508 = vcmp.eq.s32.totalorder %v228, %v466
        %vm509 = vcmp.eq.s32.totalorder %v229, %v462
        %vm510 = vcmp.eq.s32.totalorder %v229, %v466
        %vm511 = vcmp.eq.s32.totalorder %v230, %v462
        %vm512 = vcmp.eq.s32.totalorder %v230, %v466
        %vm513 = vcmp.eq.s32.totalorder %v231, %v462
        %vm514 = vcmp.eq.s32.totalorder %v231, %v466
        %vm515 = vcmp.eq.s32.totalorder %v232, %v462
        %vm516 = vcmp.eq.s32.totalorder %v232, %v466
        %vm517 = vcmp.eq.s32.totalorder %v233, %v462
        %vm518 = vcmp.eq.s32.totalorder %v233, %v466
        %vm519 = vcmp.eq.s32.totalorder %v234, %v462
        %vm520 = vcmp.eq.s32.totalorder %v234, %v466
        %vm521 = vcmp.eq.s32.totalorder %v235, %v462
        %vm522 = vcmp.eq.s32.totalorder %v235, %v466
        %vm523 = vcmp.eq.s32.totalorder %v236, %v462
        %vm524 = vcmp.eq.s32.totalorder %v236, %v466
        %vm525 = vcmp.eq.s32.totalorder %v237, %v462
        %vm526 = vcmp.eq.s32.totalorder %v237, %v466
        %vm527 = vcmp.eq.s32.totalorder %v238, %v462
        %vm528 = vcmp.eq.s32.totalorder %v238, %v466
        %vm529 = vcmp.eq.s32.totalorder %v239, %v462
        %vm530 = vcmp.eq.s32.totalorder %v239, %v466
        %v531 = vsel %vm467, 1.0, 0.0
        %v532 = vsel %vm468, 1.0, 0.0
        %v533 = vsel %vm469, 1.0, 0.0
        %v534 = vsel %vm470, 1.0, 0.0
        %v535 = vsel %vm471, 1.0, 0.0
        %v536 = vsel %vm472, 1.0, 0.0
        %v537 = vsel %vm473, 1.0, 0.0
        %v538 = vsel %vm474, 1.0, 0.0
        %v539 = vsel %vm475, 1.0, 0.0
        %v540 = vsel %vm476, 1.0, 0.0
        %v541 = vsel %vm477, 1.0, 0.0
        %v542 = vsel %vm478, 1.0, 0.0
        %v543 = vsel %vm479, 1.0, 0.0
        %v544 = vsel %vm480, 1.0, 0.0
        %v545 = vsel %vm481, 1.0, 0.0
        %v546 = vsel %vm482, 1.0, 0.0
        %v547 = vsel %vm483, 1.0, 0.0
        %v548 = vsel %vm484, 1.0, 0.0
        %v549 = vsel %vm485, 1.0, 0.0
        %v550 = vsel %vm486, 1.0, 0.0
        %v551 = vsel %vm487, 1.0, 0.0
        %v552 = vsel %vm488, 1.0, 0.0
        %v553 = vsel %vm489, 1.0, 0.0
        %v554 = vsel %vm490, 1.0, 0.0
        %v555 = vsel %vm491, 1.0, 0.0
        %v556 = vsel %vm492, 1.0, 0.0
        %v557 = vsel %vm493, 1.0, 0.0
        %v558 = vsel %vm494, 1.0, 0.0
        %v559 = vsel %vm495, 1.0, 0.0
        %v560 = vsel %vm496, 1.0, 0.0
        %v561 = vsel %vm497, 1.0, 0.0
        %v562 = vsel %vm498, 1.0, 0.0
        %v563 = vsel %vm499, 1.0, 0.0
        %v564 = vsel %vm500, 1.0, 0.0
        %v565 = vsel %vm501, 1.0, 0.0
        %v566 = vsel %vm502, 1.0, 0.0
        %v567 = vsel %vm503, 1.0, 0.0
        %v568 = vsel %vm504, 1.0, 0.0
        %v569 = vsel %vm505, 1.0, 0.0
        %v570 = vsel %vm506, 1.0, 0.0
        %v571 = vsel %vm507, 1.0, 0.0
        %v572 = vsel %vm508, 1.0, 0.0
        %v573 = vsel %vm509, 1.0, 0.0
        %v574 = vsel %vm510, 1.0, 0.0
        %v575 = vsel %vm511, 1.0, 0.0
        %v576 = vsel %vm512, 1.0, 0.0
        %v577 = vsel %vm513, 1.0, 0.0
        %v578 = vsel %vm514, 1.0, 0.0
        %v579 = vsel %vm515, 1.0, 0.0
        %v580 = vsel %vm516, 1.0, 0.0
        %v581 = vsel %vm517, 1.0, 0.0
        %v582 = vsel %vm518, 1.0, 0.0
        %v583 = vsel %vm519, 1.0, 0.0
        %v584 = vsel %vm520, 1.0, 0.0
        %v585 = vsel %vm521, 1.0, 0.0
        %v586 = vsel %vm522, 1.0, 0.0
        %v587 = vsel %vm523, 1.0, 0.0
        %v588 = vsel %vm524, 1.0, 0.0
        %v589 = vsel %vm525, 1.0, 0.0
        %v590 = vsel %vm526, 1.0, 0.0
        %v591 = vsel %vm527, 1.0, 0.0
        %v592 = vsel %vm528, 1.0, 0.0
        %v593 = vsel %vm529, 1.0, 0.0
        %v594 = vsel %vm530, 1.0, 0.0
        %s595 = scalar_lea.vmem %s178, 8 [#allocation5]
        %v596 = vld [vmem:[%s595] sm:$0xff]
        %v598 = vcombine.high %v596, %v596
        %600 = vmatprep.subr.mxu0 %v562
        %601 = vmatpush1.msra.mxu0 %v561
        %602 = vmatprep.subr.mxu0 %v560
        %603 = vmatpush1.msra.mxu0 %v559
        %604 = vmatprep.subr.mxu0 %v558
        %605 = vmatpush1.msra.mxu0 %v557
        %606 = vmatprep.subr.mxu0 %v556
        %607 = vmatpush1.msra.mxu0 %v555
        %608 = vmatprep.subr.mxu0 %v554
        %609 = vmatpush1.msra.mxu0 %v553
        %610 = vmatprep.subr.mxu0 %v552
        %611 = vmatpush1.msra.mxu0 %v551
        %612 = vmatprep.subr.mxu0 %v550
        %613 = vmatpush1.msra.mxu0 %v549
        %614 = vmatprep.subr.mxu0 %v548
        %615 = vmatpush1.msra.mxu0 %v547
        %616 = vmatprep.subr.mxu0 %v546
        %617 = vmatpush1.msra.mxu0 %v545
        %618 = vmatprep.subr.mxu0 %v544
        %619 = vmatpush1.msra.mxu0 %v543
        %620 = vmatprep.subr.mxu0 %v542
        %621 = vmatpush1.msra.mxu0 %v541
        %622 = vmatprep.subr.mxu0 %v540
        %623 = vmatpush1.msra.mxu0 %v539
        %624 = vmatprep.subr.mxu0 %v538
        %625 = vmatpush1.msra.mxu0 %v537
        %626 = vmatprep.subr.mxu0 %v536
        %627 = vmatpush1.msra.mxu0 %v535
        %628 = vmatprep.subr.mxu0 %v534
        %629 = vmatpush1.msra.mxu0 %v533
        %630 = vmatprep.subr.mxu0 %v532
        %631 = vmatpush1.msra.mxu0 %v531
        %632 = vmatprep.subr.mxu0 %v594
        %633 = vmatpush2.msra.mxu0 %v593
        %634 = vmatprep.subr.mxu0 %v592
        %635 = vmatpush2.msra.mxu0 %v591
        %636 = vmatprep.subr.mxu0 %v590
        %637 = vmatpush2.msra.mxu0 %v589
        %638 = vmatprep.subr.mxu0 %v588
        %639 = vmatpush2.msra.mxu0 %v587
        %640 = vmatprep.subr.mxu0 %v586
        %641 = vmatpush2.msra.mxu0 %v585
        %642 = vmatprep.subr.mxu0 %v584
        %643 = vmatpush2.msra.mxu0 %v583
        %644 = vmatprep.subr.mxu0 %v582
        %645 = vmatpush2.msra.mxu0 %v581
        %646 = vmatprep.subr.mxu0 %v580
        %647 = vmatpush2.msra.mxu0 %v579
        %648 = vmatprep.subr.mxu0 %v578
        %649 = vmatpush2.msra.mxu0 %v577
        %650 = vmatprep.subr.mxu0 %v576
        %651 = vmatpush2.msra.mxu0 %v575
        %652 = vmatprep.subr.mxu0 %v574
        %653 = vmatpush2.msra.mxu0 %v573
        %654 = vmatprep.subr.mxu0 %v572
        %655 = vmatpush2.msra.mxu0 %v571
        %656 = vmatprep.subr.mxu0 %v570
        %657 = vmatpush2.msra.mxu0 %v569
        %658 = vmatprep.subr.mxu0 %v568
        %659 = vmatpush2.msra.mxu0 %v567
        %660 = vmatprep.subr.mxu0 %v566
        %661 = vmatpush2.msra.mxu0 %v565
        %662 = vmatprep.subr.mxu0 %v564
        %663 = vmatpush2.msra.mxu0 %v563
        %664 = vmatprep.mubr.f32.mxu0 %v598
        %665 = vmatmul.mubr.f32.gmra.mxu0 %v596
        %v666 = vpop.f32.mrf.mxu0
        %v667 = vadd.f32 0.0, %v666
        %v668 = vpop.f32.mrf.mxu0
        %v669 = vadd.f32 0.0, %v668
        %670 = vdwg.mxu0
        %v673 = vcombine.low %v667, %v669
        %s675 = scalar_lea.vmem %s203, 8 [#allocation7]
        %676 = vst [vmem:[%s675] sm:$0xff] %v673
        %s677 = sand.u32 %s82, 1
        %s678 = scalar_lea.sflag [#allocation4], %s677
        %s679 = sand.u32 %s82, 1
        %s680 = smul.addr %s679, 16
        %s681 = scalar_lea.vmem [#allocation7], %s680
        // Predicated region
        $region37: #{tpu_custom_call.1} parent=27 // pred_check
          %p682 = pneg %p92
        $region38: #{tpu_custom_call.1} parent=27 // pred_check_branch
          %684 = sbr.rel (%p682) target = $region40
        $region39: #{tpu_custom_call.1} parent=27 // pred_region
          %s685 = smul.u32 2, %s22
          %s687 = ssub.s32 256, 256
          %688 = vsyncadd %s678, %s687
          %s689 = smul.addr %s685, 2
          %s690 = smul.addr %s689, 64
          %s691 = scalar_lea.hbm %s2, %s690
          %s692 = sshll.u32 %s681, 4
          %s693 = int_to_ptr.vmem [resolvable:$true] %s692
          %698 = dma.vmem_to_hbm [thread:$0]  %s693, 256, %s691, %s678, 128, 128, 8
        $region40: #{tpu_custom_call.1} parent=27 // pred_fallthru
          _
      $region28: #{tpu_custom_call.1} parent=5 // pred_fallthru
        _
      %p699 = scmp.le.s32.totalorder 2, %s17
      // Predicated region
      $region41: #{tpu_custom_call.1} parent=5 // pred_check
        %p700 = pneg %p699
      $region42: #{tpu_custom_call.1} parent=5 // pred_check_branch
        %702 = sbr.rel (%p700) target = $region44
      $region43: #{tpu_custom_call.1} parent=5 // pred_region
        %s703 = ssub.s32 %s17, 2
        // Predicated region
        $region45: #{tpu_custom_call.1} parent=43 // pred_check
          %p704 = pneg %p98
        $region46: #{tpu_custom_call.1} parent=43 // pred_check_branch
          %706 = sbr.rel (%p704) target = $region48
        $region47: #{tpu_custom_call.1} parent=43 // pred_region
          %s707 = sand.u32 %s83, 1
          %s708 = scalar_lea.sflag [#allocation4], %s707
          %s709 = sand.u32 %s83, 1
          %s710 = smul.addr %s709, 16
          %s711 = scalar_lea.vmem [#allocation7], %s710
          %712 = dma.done %s708, 256
        $region48: #{tpu_custom_call.1} parent=43 // pred_fallthru
          _
      $region44: #{tpu_custom_call.1} parent=5 // pred_fallthru
        _
    $region6: #{tpu_custom_call.1} parent=1 // loop_footer
      %s21 = sadd.s32 1, %s17
    $region7: #{tpu_custom_call.1} parent=1 // loop_footer_branch
      %16 = sbr.rel target = $region3
    $region8: #{tpu_custom_call.1} parent=1 // loop_exit
      _
    %713 = vsyncpa [#allocation3], 1
    %s714 = scalar_lea.sflag [#allocation3], 1
    %715 = vsyncpa %s714, 1
    %716 = vsyncpa [#allocation6], 1
    %s717 = scalar_lea.sflag [#allocation6], 1
    %718 = vsyncpa %s717, 1
    %719 = vsyncpa [#allocation4], 1
    %s720 = scalar_lea.sflag [#allocation4], 1
    %721 = vsyncpa %s720, 1

</llo_original>
